<compile_context>
chip_gen: v7x
topology: tpu7x:2x2x1
jax: 0.10.0
libtpu: 0.0.40
codegen_flags: <defaults>
</compile_context>

<pallas_src>
import functools

import jax
import jax.numpy as jnp
from jax import lax
from jax.experimental import pallas as pl
from jax.experimental.pallas import tpu as pltpu


def lstm_forward_kernel(ids_ref, eproj_ref, whh_ref, wfc_ref, bfc_ref, out_ref,
                        *, hidden_dim, seq_len, batch, vocab_pad):
    """Fused embedding lookup + LSTM recurrence + time-mean + fc + log_softmax.

    ids_ref  : (T*B, 1)   int32 VMEM  time-major flattened token ids
    eproj_ref: (Vp, 4H)   f32   VMEM  embed @ W_ih^T + b   (gate order [i,f,o,g], g cols x2)
    whh_ref  : (H, 4H)    bf16  VMEM  W_hh^T               (same gate order / g scaling)
    wfc_ref  : (H, 128)   f32   VMEM  W_fc^T / T, zero-padded past column 2
    bfc_ref  : (1, 128)   f32   VMEM  b_fc, -1e30 in padded columns
    out_ref  : (B, 2)     f32   VMEM  log-probabilities
    """
    H, T, B, Vp = hidden_dim, seq_len, batch, vocab_pad

    # ---- Prologue: embedding gather fused as one-hot @ E_proj (bias already folded in).
    ids = ids_ref[...]                                           # (T*B, 1) int32
    vocab_iota = lax.broadcasted_iota(jnp.int32, (T * B, Vp), 1)
    onehot = (vocab_iota == ids).astype(jnp.float32)             # (T*B, Vp)
    x_proj = jnp.dot(onehot, eproj_ref[...],
                     preferred_element_type=jnp.float32)         # (T*B, 4H), exact row select

    whh = whh_ref[...]                                           # (H, 4H) bf16, loaded once
    # TODO(synk): W_hh could be held in MXU weight registers across steps via
    # pltpu.matmul_push_rhs / matmul_acc_lhs / matmul_pop; skipped to keep lowering simple
    # at these tiny shapes.

    h = jnp.zeros((B, H), jnp.float32)
    c = jnp.zeros((B, H), jnp.float32)
    acc = jnp.zeros((B, H), jnp.float32)

    # ---- Fully unrolled recurrence (T is a small static constant).  Per-step critical path:
    #      one bf16 MXU matmul + one sigmoid pass (all 4 gates) + one tanh(c) + VPU FMAs.
    for t in range(T):
        gates = x_proj[t * B:(t + 1) * B, :] + jnp.dot(
            h.astype(jnp.bfloat16), whh,
            preferred_element_type=jnp.float32)                  # (B, 4H), order [i, f, o, g]
        sig = jax.nn.sigmoid(gates)                              # one EUP dispatch, whole vreg
        i_g = sig[:, 0 * H:1 * H]
        f_g = sig[:, 1 * H:2 * H]
        o_g = sig[:, 2 * H:3 * H]
        g_g = 2.0 * sig[:, 3 * H:4 * H] - 1.0                    # tanh(x) = 2*sigmoid(2x) - 1
        c = f_g * c + i_g * g_g
        h = o_g * jnp.tanh(c)
        acc = acc + h

    # ---- Epilogue: 1/T mean folded into wfc host-side; padded logits sit at -1e30 so the
    #      max / exp-sum run full-width; output sliced to the 2 real classes.
    y = jnp.dot(acc, wfc_ref[...],
                preferred_element_type=jnp.float32) + bfc_ref[...]   # (B, 128)
    m = jnp.max(y, axis=1, keepdims=True)
    z = y - m
    lse = jnp.log(jnp.sum(jnp.exp(z), axis=1, keepdims=True))
    out_ref[...] = (z - lse)[:, :2]                              # log_softmax(dim=1)


def prepare_params(embed_w, w_ih, w_hh, b_ih, b_hh, w_fc, b_fc, seq_len):
    """One-time conversion of PyTorch-layout params into kernel layout.  Call once and cache so
    only the pallas_call remains on the per-step hot path."""
    H = w_hh.shape[1]
    V, _ = embed_w.shape

    def permute_gates(a):
        # PyTorch gate order [i, f, g, o] -> kernel order [i, f, o, g] along the last axis.
        return jnp.concatenate(
            [a[..., 0:2 * H], a[..., 3 * H:4 * H], a[..., 2 * H:3 * H]], axis=-1)

    def double_g(a):
        # Pre-double the g block so tanh(x) = 2*sigmoid(2x) - 1 falls out of one sigmoid pass.
        return jnp.concatenate([a[..., 0:3 * H], 2.0 * a[..., 3 * H:4 * H]], axis=-1)

    wih_t = double_g(permute_gates(w_ih.T.astype(jnp.float32)))          # (E, 4H)
    whh_t = double_g(permute_gates(w_hh.T.astype(jnp.float32)))          # (H, 4H)
    b = double_g(permute_gates((b_ih + b_hh).astype(jnp.float32)))       # (4H,)

    # Fuse embedding with the input projection (gather commutes with the linear):
    #   E_proj[v] = embed[v] @ W_ih^T + b  ->  per-token x-projection is a row lookup.
    eproj = embed_w.astype(jnp.float32) @ wih_t + b[None, :]             # (V, 4H)
    vocab_pad = ((V + 127) // 128) * 128                                 # lane-aligned one-hot
    eproj_pad = jnp.zeros((vocab_pad, 4 * H), jnp.float32).at[:V, :].set(eproj)

    whh_bf16 = whh_t.astype(jnp.bfloat16)                                # bf16 MXU operand

    # Fold the 1/T mean into the fc weights; pad to 128 lanes (pad logits pinned at -1e30).
    wfc = jnp.zeros((H, 128), jnp.float32).at[:, :2].set(
        w_fc.T.astype(jnp.float32) / float(seq_len))
    bfc = jnp.full((1, 128), -1e30, jnp.float32).at[0, :2].set(b_fc.astype(jnp.float32))

    return eproj_pad, whh_bf16, wfc, bfc


@functools.partial(jax.jit, static_argnames=("seq_len", "batch", "hidden_dim"))
def lstm_forward(sentence, eproj, whh, wfc, bfc, *, seq_len, batch, hidden_dim):
    """sentence: (batch, seq_len) int32 token ids.  Returns (batch, 2) log-probs."""
    vocab_pad = eproj.shape[0]
    # Time-major flattened ids, (T*B, 1), matching the kernel's one-hot layout.
    ids = sentence.T.reshape(seq_len * batch, 1).astype(jnp.int32)

    vmem = lambda: pl.BlockSpec(memory_space=pltpu.MemorySpace.VMEM)
    kernel = functools.partial(lstm_forward_kernel, hidden_dim=hidden_dim,
                               seq_len=seq_len, batch=batch, vocab_pad=vocab_pad)
    # Single grid point: total VMEM footprint is ~150 KiB, far under every generation's budget.
    # TODO(synk): if scaled up (large T*B or H), chunk x_proj over time with a grid + BlockSpec
    # pipelining and add a "parallel" batch axis so v7x's two TensorCores both get work.
    return pl.pallas_call(
        kernel,
        out_shape=jax.ShapeDtypeStruct((batch, 2), jnp.float32),
        in_specs=[vmem() for _ in range(5)],
        out_specs=vmem(),
    )(ids, eproj, whh, wfc, bfc)


def lstm_forward_ref(x_emb, w_ih, w_hh, b_ih, b_hh, w_fc, b_fc):
    """Pure-JAX reference in the original PyTorch gate order [i, f, g, o]."""
    H = w_hh.shape[1]
    b = (b_ih + b_hh).astype(jnp.float32)

    def step(carry, x_t):
        h, c = carry
        gates = x_t @ w_ih.T + h @ w_hh.T + b
        i_g = jax.nn.sigmoid(gates[:, 0 * H:1 * H])
        f_g = jax.nn.sigmoid(gates[:, 1 * H:2 * H])
        g_g = jnp.tanh(gates[:, 2 * H:3 * H])
        o_g = jax.nn.sigmoid(gates[:, 3 * H:4 * H])
        c_new = f_g * c + i_g * g_g
        h_new = o_g * jnp.tanh(c_new)
        return (h_new, c_new), h_new

    batch = x_emb.shape[1]
    h0 = jnp.zeros((batch, H), jnp.float32)
    c0 = jnp.zeros((batch, H), jnp.float32)
    _, hs = lax.scan(step, (h0, c0), x_emb.astype(jnp.float32))
    y = jnp.mean(hs, axis=0) @ w_fc.T + b_fc
    return jax.nn.log_softmax(y, axis=1)


if __name__ == "__main__":
    # Deterministic synthetic parameters (shapes implied by the module's __init__).
    vocab_size = 50
    embedding_dim = 32
    hidden_dim = 32
    batch_size = 8
    seq_len = 8

    key = jax.random.PRNGKey(0)
    keys = jax.random.split(key, 8)

    # Embedding table (stand-in for vocab.vectors).
    embed_w = jax.random.normal(keys[0], (vocab_size, embedding_dim), jnp.float32)

    # LSTM / Linear params, uniform(-1/sqrt(H), 1/sqrt(H)) like PyTorch defaults.
    k = 1.0 / jnp.sqrt(jnp.float32(hidden_dim))
    w_ih = jax.random.uniform(keys[1], (4 * hidden_dim, embedding_dim), jnp.float32, -k, k)
    w_hh = jax.random.uniform(keys[2], (4 * hidden_dim, hidden_dim), jnp.float32, -k, k)
    b_ih = jax.random.uniform(keys[3], (4 * hidden_dim,), jnp.float32, -k, k)
    b_hh = jax.random.uniform(keys[4], (4 * hidden_dim,), jnp.float32, -k, k)
    w_fc = jax.random.uniform(keys[5], (2, hidden_dim), jnp.float32, -k, k)
    b_fc = jax.random.uniform(keys[6], (2,), jnp.float32, -k, k)

    # Input token ids, (batch, seq_len).
    sentence = jax.random.randint(keys[7], (batch_size, seq_len), 0, vocab_size, jnp.int32)

    # One-time weight preparation (gate permute / g-doubling / embed@W_ih fusion / fc fold).
    eproj, whh_b, wfc_p, bfc_p = prepare_params(
        embed_w, w_ih, w_hh, b_ih, b_hh, w_fc, b_fc, seq_len)
    eproj, whh_b, wfc_p, bfc_p = jax.block_until_ready((eproj, whh_b, wfc_p, bfc_p))

    out = lstm_forward(sentence, eproj, whh_b, wfc_p, bfc_p,
                       seq_len=seq_len, batch=batch_size, hidden_dim=hidden_dim)
    out = jax.block_until_ready(out)

    assert out.shape == (batch_size, 2)
    assert bool(jnp.all(jnp.isfinite(out)))
    # Rows of log_softmax must exp-sum to 1.
    assert bool(jnp.allclose(jnp.sum(jnp.exp(out), axis=1), 1.0, atol=1e-5))

    # Cross-check against a pure-JAX f32 reference (original gate order).  Tolerance loosened
    # vs. the earlier all-f32 kernel because the recurrence matmul now uses bf16 MXU inputs.
    embeds = jnp.take(embed_w, sentence.T, axis=0)          # (seq_len, batch, emb)
    ref = lstm_forward_ref(embeds, w_ih, w_hh, b_ih, b_hh, w_fc, b_fc)
    assert bool(jnp.allclose(out, ref, atol=2e-2, rtol=2e-2)), (
        f"max abs err {float(jnp.max(jnp.abs(out - ref)))}")

    print("KERNEL_OK")
</pallas_src>

<mosaic_0001>
module attributes {stable_mosaic.version = 11 : i64} {
  func.func @lstm_forward_kernel(%arg0: memref<64x1xi32, #tpu.memory_space<vmem>>, %arg1: memref<128x128xf32, #tpu.memory_space<vmem>>, %arg2: memref<32x128xbf16, #tpu.memory_space<vmem>>, %arg3: memref<32x128xf32, #tpu.memory_space<vmem>>, %arg4: memref<1x128xf32, #tpu.memory_space<vmem>>, %arg5: memref<8x2xf32, #tpu.memory_space<vmem>>) attributes {dimension_semantics = [], scalar_prefetch = 0 : i64, scratch_operands = 0 : i64, tpu.core_type = #tpu.core_type<tc>} {
    %c0 = arith.constant 0 : index
    %c0_0 = arith.constant 0 : index
    %0 = vector.load %arg0[%c0, %c0_0] : memref<64x1xi32, #tpu.memory_space<vmem>>, vector<64x1xi32>
    %1 = tpu.iota {dimensions = array<i32: 1>} : vector<64x128xi32>
    %2 = vector.broadcast %0 : vector<64x1xi32> to vector<64x128xi32>
    %3 = arith.cmpi eq, %1, %2 : vector<64x128xi32>
    %4 = arith.extui %3 : vector<64x128xi1> to vector<64x128xi32>
    %5 = arith.sitofp %4 : vector<64x128xi32> to vector<64x128xf32>
    %c0_1 = arith.constant 0 : index
    %c0_2 = arith.constant 0 : index
    %6 = vector.load %arg1[%c0_1, %c0_2] : memref<128x128xf32, #tpu.memory_space<vmem>>, vector<128x128xf32>
    %cst = arith.constant dense<0.000000e+00> : vector<64x128xf32>
    %7 = tpu.matmul %5, %6, %cst {dimension_numbers = #tpu.dot_dimension_numbers<[1], [0], [0], [1], [0, 0, 1, 1], [], []>} : vector<64x128xf32>, vector<128x128xf32>, vector<64x128xf32> -> vector<64x128xf32>
    %c0_3 = arith.constant 0 : index
    %c0_4 = arith.constant 0 : index
    %8 = vector.load %arg2[%c0_3, %c0_4] : memref<32x128xbf16, #tpu.memory_space<vmem>>, vector<32x128xbf16>
    %cst_5 = arith.constant 0.000000e+00 : f32
    %9 = vector.broadcast %cst_5 : f32 to vector<8x32xf32>
    %cst_6 = arith.constant 0.000000e+00 : f32
    %10 = vector.broadcast %cst_6 : f32 to vector<8x32xf32>
    %cst_7 = arith.constant 0.000000e+00 : f32
    %11 = vector.broadcast %cst_7 : f32 to vector<8x32xf32>
    %12 = vector.extract_strided_slice %7 {offsets = [0, 0], sizes = [8, 128], strides = [1, 1]} : vector<64x128xf32> to vector<8x128xf32>
    %13 = arith.truncf %9 : vector<8x32xf32> to vector<8x32xbf16>
    %cst_8 = arith.constant dense<0.000000e+00> : vector<8x128xf32>
    %14 = tpu.matmul %13, %8, %cst_8 {dimension_numbers = #tpu.dot_dimension_numbers<[1], [0], [0], [1], [0, 0, 1, 1], [], []>} : vector<8x32xbf16>, vector<32x128xbf16>, vector<8x128xf32> -> vector<8x128xf32>
    %15 = arith.addf %12, %14 : vector<8x128xf32>
    %16 = arith.negf %15 : vector<8x128xf32>
    %17 = math.exp %16 : vector<8x128xf32>
    %cst_9 = arith.constant 1.000000e+00 : f32
    %18 = vector.broadcast %cst_9 : f32 to vector<8x128xf32>
    %19 = arith.addf %18, %17 : vector<8x128xf32>
    %20 = arith.divf %18, %19 : vector<8x128xf32>
    %21 = vector.extract_strided_slice %20 {offsets = [0, 0], sizes = [8, 32], strides = [1, 1]} : vector<8x128xf32> to vector<8x32xf32>
    %22 = vector.extract_strided_slice %20 {offsets = [0, 32], sizes = [8, 32], strides = [1, 1]} : vector<8x128xf32> to vector<8x32xf32>
    %23 = vector.extract_strided_slice %20 {offsets = [0, 64], sizes = [8, 32], strides = [1, 1]} : vector<8x128xf32> to vector<8x32xf32>
    %24 = vector.extract_strided_slice %20 {offsets = [0, 96], sizes = [8, 32], strides = [1, 1]} : vector<8x128xf32> to vector<8x32xf32>
    %cst_10 = arith.constant 2.000000e+00 : f32
    %25 = vector.broadcast %cst_10 : f32 to vector<8x32xf32>
    %26 = arith.mulf %25, %24 : vector<8x32xf32>
    %cst_11 = arith.constant 1.000000e+00 : f32
    %27 = vector.broadcast %cst_11 : f32 to vector<8x32xf32>
    %28 = arith.subf %26, %27 : vector<8x32xf32>
    %29 = arith.mulf %22, %10 : vector<8x32xf32>
    %30 = arith.mulf %21, %28 : vector<8x32xf32>
    %31 = arith.addf %29, %30 : vector<8x32xf32>
    %32 = math.tanh %31 : vector<8x32xf32>
    %33 = arith.mulf %23, %32 : vector<8x32xf32>
    %34 = arith.addf %11, %33 : vector<8x32xf32>
    %35 = vector.extract_strided_slice %7 {offsets = [8, 0], sizes = [8, 128], strides = [1, 1]} : vector<64x128xf32> to vector<8x128xf32>
    %36 = arith.truncf %33 : vector<8x32xf32> to vector<8x32xbf16>
    %cst_12 = arith.constant dense<0.000000e+00> : vector<8x128xf32>
    %37 = tpu.matmul %36, %8, %cst_12 {dimension_numbers = #tpu.dot_dimension_numbers<[1], [0], [0], [1], [0, 0, 1, 1], [], []>} : vector<8x32xbf16>, vector<32x128xbf16>, vector<8x128xf32> -> vector<8x128xf32>
    %38 = arith.addf %35, %37 : vector<8x128xf32>
    %39 = arith.negf %38 : vector<8x128xf32>
    %40 = math.exp %39 : vector<8x128xf32>
    %cst_13 = arith.constant 1.000000e+00 : f32
    %41 = vector.broadcast %cst_13 : f32 to vector<8x128xf32>
    %42 = arith.addf %41, %40 : vector<8x128xf32>
    %43 = arith.divf %41, %42 : vector<8x128xf32>
    %44 = vector.extract_strided_slice %43 {offsets = [0, 0], sizes = [8, 32], strides = [1, 1]} : vector<8x128xf32> to vector<8x32xf32>
    %45 = vector.extract_strided_slice %43 {offsets = [0, 32], sizes = [8, 32], strides = [1, 1]} : vector<8x128xf32> to vector<8x32xf32>
    %46 = vector.extract_strided_slice %43 {offsets = [0, 64], sizes = [8, 32], strides = [1, 1]} : vector<8x128xf32> to vector<8x32xf32>
    %47 = vector.extract_strided_slice %43 {offsets = [0, 96], sizes = [8, 32], strides = [1, 1]} : vector<8x128xf32> to vector<8x32xf32>
    %cst_14 = arith.constant 2.000000e+00 : f32
    %48 = vector.broadcast %cst_14 : f32 to vector<8x32xf32>
    %49 = arith.mulf %48, %47 : vector<8x32xf32>
    %cst_15 = arith.constant 1.000000e+00 : f32
    %50 = vector.broadcast %cst_15 : f32 to vector<8x32xf32>
    %51 = arith.subf %49, %50 : vector<8x32xf32>
    %52 = arith.mulf %45, %31 : vector<8x32xf32>
    %53 = arith.mulf %44, %51 : vector<8x32xf32>
    %54 = arith.addf %52, %53 : vector<8x32xf32>
    %55 = math.tanh %54 : vector<8x32xf32>
    %56 = arith.mulf %46, %55 : vector<8x32xf32>
    %57 = arith.addf %34, %56 : vector<8x32xf32>
    %58 = vector.extract_strided_slice %7 {offsets = [16, 0], sizes = [8, 128], strides = [1, 1]} : vector<64x128xf32> to vector<8x128xf32>
    %59 = arith.truncf %56 : vector<8x32xf32> to vector<8x32xbf16>
    %cst_16 = arith.constant dense<0.000000e+00> : vector<8x128xf32>
    %60 = tpu.matmul %59, %8, %cst_16 {dimension_numbers = #tpu.dot_dimension_numbers<[1], [0], [0], [1], [0, 0, 1, 1], [], []>} : vector<8x32xbf16>, vector<32x128xbf16>, vector<8x128xf32> -> vector<8x128xf32>
    %61 = arith.addf %58, %60 : vector<8x128xf32>
    %62 = arith.negf %61 : vector<8x128xf32>
    %63 = math.exp %62 : vector<8x128xf32>
    %cst_17 = arith.constant 1.000000e+00 : f32
    %64 = vector.broadcast %cst_17 : f32 to vector<8x128xf32>
    %65 = arith.addf %64, %63 : vector<8x128xf32>
    %66 = arith.divf %64, %65 : vector<8x128xf32>
    %67 = vector.extract_strided_slice %66 {offsets = [0, 0], sizes = [8, 32], strides = [1, 1]} : vector<8x128xf32> to vector<8x32xf32>
    %68 = vector.extract_strided_slice %66 {offsets = [0, 32], sizes = [8, 32], strides = [1, 1]} : vector<8x128xf32> to vector<8x32xf32>
    %69 = vector.extract_strided_slice %66 {offsets = [0, 64], sizes = [8, 32], strides = [1, 1]} : vector<8x128xf32> to vector<8x32xf32>
    %70 = vector.extract_strided_slice %66 {offsets = [0, 96], sizes = [8, 32], strides = [1, 1]} : vector<8x128xf32> to vector<8x32xf32>
    %cst_18 = arith.constant 2.000000e+00 : f32
    %71 = vector.broadcast %cst_18 : f32 to vector<8x32xf32>
    %72 = arith.mulf %71, %70 : vector<8x32xf32>
    %cst_19 = arith.constant 1.000000e+00 : f32
    %73 = vector.broadcast %cst_19 : f32 to vector<8x32xf32>
    %74 = arith.subf %72, %73 : vector<8x32xf32>
    %75 = arith.mulf %68, %54 : vector<8x32xf32>
    %76 = arith.mulf %67, %74 : vector<8x32xf32>
    %77 = arith.addf %75, %76 : vector<8x32xf32>
    %78 = math.tanh %77 : vector<8x32xf32>
    %79 = arith.mulf %69, %78 : vector<8x32xf32>
    %80 = arith.addf %57, %79 : vector<8x32xf32>
    %81 = vector.extract_strided_slice %7 {offsets = [24, 0], sizes = [8, 128], strides = [1, 1]} : vector<64x128xf32> to vector<8x128xf32>
    %82 = arith.truncf %79 : vector<8x32xf32> to vector<8x32xbf16>
    %cst_20 = arith.constant dense<0.000000e+00> : vector<8x128xf32>
    %83 = tpu.matmul %82, %8, %cst_20 {dimension_numbers = #tpu.dot_dimension_numbers<[1], [0], [0], [1], [0, 0, 1, 1], [], []>} : vector<8x32xbf16>, vector<32x128xbf16>, vector<8x128xf32> -> vector<8x128xf32>
    %84 = arith.addf %81, %83 : vector<8x128xf32>
    %85 = arith.negf %84 : vector<8x128xf32>
    %86 = math.exp %85 : vector<8x128xf32>
    %cst_21 = arith.constant 1.000000e+00 : f32
    %87 = vector.broadcast %cst_21 : f32 to vector<8x128xf32>
    %88 = arith.addf %87, %86 : vector<8x128xf32>
    %89 = arith.divf %87, %88 : vector<8x128xf32>
    %90 = vector.extract_strided_slice %89 {offsets = [0, 0], sizes = [8, 32], strides = [1, 1]} : vector<8x128xf32> to vector<8x32xf32>
    %91 = vector.extract_strided_slice %89 {offsets = [0, 32], sizes = [8, 32], strides = [1, 1]} : vector<8x128xf32> to vector<8x32xf32>
    %92 = vector.extract_strided_slice %89 {offsets = [0, 64], sizes = [8, 32], strides = [1, 1]} : vector<8x128xf32> to vector<8x32xf32>
    %93 = vector.extract_strided_slice %89 {offsets = [0, 96], sizes = [8, 32], strides = [1, 1]} : vector<8x128xf32> to vector<8x32xf32>
    %cst_22 = arith.constant 2.000000e+00 : f32
    %94 = vector.broadcast %cst_22 : f32 to vector<8x32xf32>
    %95 = arith.mulf %94, %93 : vector<8x32xf32>
    %cst_23 = arith.constant 1.000000e+00 : f32
    %96 = vector.broadcast %cst_23 : f32 to vector<8x32xf32>
    %97 = arith.subf %95, %96 : vector<8x32xf32>
    %98 = arith.mulf %91, %77 : vector<8x32xf32>
    %99 = arith.mulf %90, %97 : vector<8x32xf32>
    %100 = arith.addf %98, %99 : vector<8x32xf32>
    %101 = math.tanh %100 : vector<8x32xf32>
    %102 = arith.mulf %92, %101 : vector<8x32xf32>
    %103 = arith.addf %80, %102 : vector<8x32xf32>
    %104 = vector.extract_strided_slice %7 {offsets = [32, 0], sizes = [8, 128], strides = [1, 1]} : vector<64x128xf32> to vector<8x128xf32>
    %105 = arith.truncf %102 : vector<8x32xf32> to vector<8x32xbf16>
    %cst_24 = arith.constant dense<0.000000e+00> : vector<8x128xf32>
    %106 = tpu.matmul %105, %8, %cst_24 {dimension_numbers = #tpu.dot_dimension_numbers<[1], [0], [0], [1], [0, 0, 1, 1], [], []>} : vector<8x32xbf16>, vector<32x128xbf16>, vector<8x128xf32> -> vector<8x128xf32>
    %107 = arith.addf %104, %106 : vector<8x128xf32>
    %108 = arith.negf %107 : vector<8x128xf32>
    %109 = math.exp %108 : vector<8x128xf32>
    %cst_25 = arith.constant 1.000000e+00 : f32
    %110 = vector.broadcast %cst_25 : f32 to vector<8x128xf32>
    %111 = arith.addf %110, %109 : vector<8x128xf32>
    %112 = arith.divf %110, %111 : vector<8x128xf32>
    %113 = vector.extract_strided_slice %112 {offsets = [0, 0], sizes = [8, 32], strides = [1, 1]} : vector<8x128xf32> to vector<8x32xf32>
    %114 = vector.extract_strided_slice %112 {offsets = [0, 32], sizes = [8, 32], strides = [1, 1]} : vector<8x128xf32> to vector<8x32xf32>
    %115 = vector.extract_strided_slice %112 {offsets = [0, 64], sizes = [8, 32], strides = [1, 1]} : vector<8x128xf32> to vector<8x32xf32>
    %116 = vector.extract_strided_slice %112 {offsets = [0, 96], sizes = [8, 32], strides = [1, 1]} : vector<8x128xf32> to vector<8x32xf32>
    %cst_26 = arith.constant 2.000000e+00 : f32
    %117 = vector.broadcast %cst_26 : f32 to vector<8x32xf32>
    %118 = arith.mulf %117, %116 : vector<8x32xf32>
    %cst_27 = arith.constant 1.000000e+00 : f32
    %119 = vector.broadcast %cst_27 : f32 to vector<8x32xf32>
    %120 = arith.subf %118, %119 : vector<8x32xf32>
    %121 = arith.mulf %114, %100 : vector<8x32xf32>
    %122 = arith.mulf %113, %120 : vector<8x32xf32>
    %123 = arith.addf %121, %122 : vector<8x32xf32>
    %124 = math.tanh %123 : vector<8x32xf32>
    %125 = arith.mulf %115, %124 : vector<8x32xf32>
    %126 = arith.addf %103, %125 : vector<8x32xf32>
    %127 = vector.extract_strided_slice %7 {offsets = [40, 0], sizes = [8, 128], strides = [1, 1]} : vector<64x128xf32> to vector<8x128xf32>
    %128 = arith.truncf %125 : vector<8x32xf32> to vector<8x32xbf16>
    %cst_28 = arith.constant dense<0.000000e+00> : vector<8x128xf32>
    %129 = tpu.matmul %128, %8, %cst_28 {dimension_numbers = #tpu.dot_dimension_numbers<[1], [0], [0], [1], [0, 0, 1, 1], [], []>} : vector<8x32xbf16>, vector<32x128xbf16>, vector<8x128xf32> -> vector<8x128xf32>
    %130 = arith.addf %127, %129 : vector<8x128xf32>
    %131 = arith.negf %130 : vector<8x128xf32>
    %132 = math.exp %131 : vector<8x128xf32>
    %cst_29 = arith.constant 1.000000e+00 : f32
    %133 = vector.broadcast %cst_29 : f32 to vector<8x128xf32>
    %134 = arith.addf %133, %132 : vector<8x128xf32>
    %135 = arith.divf %133, %134 : vector<8x128xf32>
    %136 = vector.extract_strided_slice %135 {offsets = [0, 0], sizes = [8, 32], strides = [1, 1]} : vector<8x128xf32> to vector<8x32xf32>
    %137 = vector.extract_strided_slice %135 {offsets = [0, 32], sizes = [8, 32], strides = [1, 1]} : vector<8x128xf32> to vector<8x32xf32>
    %138 = vector.extract_strided_slice %135 {offsets = [0, 64], sizes = [8, 32], strides = [1, 1]} : vector<8x128xf32> to vector<8x32xf32>
    %139 = vector.extract_strided_slice %135 {offsets = [0, 96], sizes = [8, 32], strides = [1, 1]} : vector<8x128xf32> to vector<8x32xf32>
    %cst_30 = arith.constant 2.000000e+00 : f32
    %140 = vector.broadcast %cst_30 : f32 to vector<8x32xf32>
    %141 = arith.mulf %140, %139 : vector<8x32xf32>
    %cst_31 = arith.constant 1.000000e+00 : f32
    %142 = vector.broadcast %cst_31 : f32 to vector<8x32xf32>
    %143 = arith.subf %141, %142 : vector<8x32xf32>
    %144 = arith.mulf %137, %123 : vector<8x32xf32>
    %145 = arith.mulf %136, %143 : vector<8x32xf32>
    %146 = arith.addf %144, %145 : vector<8x32xf32>
    %147 = math.tanh %146 : vector<8x32xf32>
    %148 = arith.mulf %138, %147 : vector<8x32xf32>
    %149 = arith.addf %126, %148 : vector<8x32xf32>
    %150 = vector.extract_strided_slice %7 {offsets = [48, 0], sizes = [8, 128], strides = [1, 1]} : vector<64x128xf32> to vector<8x128xf32>
    %151 = arith.truncf %148 : vector<8x32xf32> to vector<8x32xbf16>
    %cst_32 = arith.constant dense<0.000000e+00> : vector<8x128xf32>
    %152 = tpu.matmul %151, %8, %cst_32 {dimension_numbers = #tpu.dot_dimension_numbers<[1], [0], [0], [1], [0, 0, 1, 1], [], []>} : vector<8x32xbf16>, vector<32x128xbf16>, vector<8x128xf32> -> vector<8x128xf32>
    %153 = arith.addf %150, %152 : vector<8x128xf32>
    %154 = arith.negf %153 : vector<8x128xf32>
    %155 = math.exp %154 : vector<8x128xf32>
    %cst_33 = arith.constant 1.000000e+00 : f32
    %156 = vector.broadcast %cst_33 : f32 to vector<8x128xf32>
    %157 = arith.addf %156, %155 : vector<8x128xf32>
    %158 = arith.divf %156, %157 : vector<8x128xf32>
    %159 = vector.extract_strided_slice %158 {offsets = [0, 0], sizes = [8, 32], strides = [1, 1]} : vector<8x128xf32> to vector<8x32xf32>
    %160 = vector.extract_strided_slice %158 {offsets = [0, 32], sizes = [8, 32], strides = [1, 1]} : vector<8x128xf32> to vector<8x32xf32>
    %161 = vector.extract_strided_slice %158 {offsets = [0, 64], sizes = [8, 32], strides = [1, 1]} : vector<8x128xf32> to vector<8x32xf32>
    %162 = vector.extract_strided_slice %158 {offsets = [0, 96], sizes = [8, 32], strides = [1, 1]} : vector<8x128xf32> to vector<8x32xf32>
    %cst_34 = arith.constant 2.000000e+00 : f32
    %163 = vector.broadcast %cst_34 : f32 to vector<8x32xf32>
    %164 = arith.mulf %163, %162 : vector<8x32xf32>
    %cst_35 = arith.constant 1.000000e+00 : f32
    %165 = vector.broadcast %cst_35 : f32 to vector<8x32xf32>
    %166 = arith.subf %164, %165 : vector<8x32xf32>
    %167 = arith.mulf %160, %146 : vector<8x32xf32>
    %168 = arith.mulf %159, %166 : vector<8x32xf32>
    %169 = arith.addf %167, %168 : vector<8x32xf32>
    %170 = math.tanh %169 : vector<8x32xf32>
    %171 = arith.mulf %161, %170 : vector<8x32xf32>
    %172 = arith.addf %149, %171 : vector<8x32xf32>
    %173 = vector.extract_strided_slice %7 {offsets = [56, 0], sizes = [8, 128], strides = [1, 1]} : vector<64x128xf32> to vector<8x128xf32>
    %174 = arith.truncf %171 : vector<8x32xf32> to vector<8x32xbf16>
    %cst_36 = arith.constant dense<0.000000e+00> : vector<8x128xf32>
    %175 = tpu.matmul %174, %8, %cst_36 {dimension_numbers = #tpu.dot_dimension_numbers<[1], [0], [0], [1], [0, 0, 1, 1], [], []>} : vector<8x32xbf16>, vector<32x128xbf16>, vector<8x128xf32> -> vector<8x128xf32>
    %176 = arith.addf %173, %175 : vector<8x128xf32>
    %177 = arith.negf %176 : vector<8x128xf32>
    %178 = math.exp %177 : vector<8x128xf32>
    %cst_37 = arith.constant 1.000000e+00 : f32
    %179 = vector.broadcast %cst_37 : f32 to vector<8x128xf32>
    %180 = arith.addf %179, %178 : vector<8x128xf32>
    %181 = arith.divf %179, %180 : vector<8x128xf32>
    %182 = vector.extract_strided_slice %181 {offsets = [0, 0], sizes = [8, 32], strides = [1, 1]} : vector<8x128xf32> to vector<8x32xf32>
    %183 = vector.extract_strided_slice %181 {offsets = [0, 32], sizes = [8, 32], strides = [1, 1]} : vector<8x128xf32> to vector<8x32xf32>
    %184 = vector.extract_strided_slice %181 {offsets = [0, 64], sizes = [8, 32], strides = [1, 1]} : vector<8x128xf32> to vector<8x32xf32>
    %185 = vector.extract_strided_slice %181 {offsets = [0, 96], sizes = [8, 32], strides = [1, 1]} : vector<8x128xf32> to vector<8x32xf32>
    %cst_38 = arith.constant 2.000000e+00 : f32
    %186 = vector.broadcast %cst_38 : f32 to vector<8x32xf32>
    %187 = arith.mulf %186, %185 : vector<8x32xf32>
    %cst_39 = arith.constant 1.000000e+00 : f32
    %188 = vector.broadcast %cst_39 : f32 to vector<8x32xf32>
    %189 = arith.subf %187, %188 : vector<8x32xf32>
    %190 = arith.mulf %183, %169 : vector<8x32xf32>
    %191 = arith.mulf %182, %189 : vector<8x32xf32>
    %192 = arith.addf %190, %191 : vector<8x32xf32>
    %193 = math.tanh %192 : vector<8x32xf32>
    %194 = arith.mulf %184, %193 : vector<8x32xf32>
    %195 = arith.addf %172, %194 : vector<8x32xf32>
    %c0_40 = arith.constant 0 : index
    %c0_41 = arith.constant 0 : index
    %196 = vector.load %arg3[%c0_40, %c0_41] : memref<32x128xf32, #tpu.memory_space<vmem>>, vector<32x128xf32>
    %cst_42 = arith.constant dense<0.000000e+00> : vector<8x128xf32>
    %197 = tpu.matmul %195, %196, %cst_42 {dimension_numbers = #tpu.dot_dimension_numbers<[1], [0], [0], [1], [0, 0, 1, 1], [], []>} : vector<8x32xf32>, vector<32x128xf32>, vector<8x128xf32> -> vector<8x128xf32>
    %c0_43 = arith.constant 0 : index
    %c0_44 = arith.constant 0 : index
    %198 = vector.load %arg4[%c0_43, %c0_44] : memref<1x128xf32, #tpu.memory_space<vmem>>, vector<1x128xf32>
    %199 = vector.broadcast %198 : vector<1x128xf32> to vector<8x128xf32>
    %200 = arith.addf %197, %199 : vector<8x128xf32>
    %cst_45 = arith.constant dense<0xFF800000> : vector<8xf32>
    %201 = vector.multi_reduction <maximumf>, %200, %cst_45 [1] : vector<8x128xf32> to vector<8xf32>
    %202 = vector.shape_cast %201 : vector<8xf32> to vector<8x1xf32>
    %203 = vector.broadcast %202 : vector<8x1xf32> to vector<8x128xf32>
    %204 = arith.subf %200, %203 : vector<8x128xf32>
    %205 = math.exp %204 : vector<8x128xf32>
    %cst_46 = arith.constant dense<0.000000e+00> : vector<8xf32>
    %206 = vector.multi_reduction <add>, %205, %cst_46 [1] : vector<8x128xf32> to vector<8xf32>
    %207 = vector.shape_cast %206 : vector<8xf32> to vector<8x1xf32>
    %208 = math.log %207 : vector<8x1xf32>
    %209 = vector.broadcast %208 : vector<8x1xf32> to vector<8x128xf32>
    %210 = arith.subf %204, %209 : vector<8x128xf32>
    %211 = vector.extract_strided_slice %210 {offsets = [0, 0], sizes = [8, 2], strides = [1, 1]} : vector<8x128xf32> to vector<8x2xf32>
    %c0_47 = arith.constant 0 : index
    %c0_48 = arith.constant 0 : index
    %212 = vector.load %arg5[%c0_47, %c0_48] : memref<8x2xf32, #tpu.memory_space<vmem>>, vector<8x2xf32>
    tpu.vector_store %arg5[%c0_47, %c0_48], %211 {strides = array<i32>} : memref<8x2xf32, #tpu.memory_space<vmem>>, vector<8x2xf32>,
    return
  }
}

</mosaic_0001>

<llo_original>
// kernel: lstm_forward.1
$region0: #{lstm_forward.1}
  #allocation0 [shape = 'u32[]', space=smem, size = 0x4, offset = 0x4, fixed_abs, tag = 'smem constant byte address 0x4 - core index']
  #allocation1 [shape = 'u32[144,128]{1,0:T(1,128)}', space=vmem, size = 0x12000, scoped, tag = 'internal scratch']
  %s0 = inlined_call_operand.vmem [shape: s32[64,1], index: 0, kind: input, shape index: {}]
  %s1 = inlined_call_operand.hbm [shape: f32[128,128], index: 1, kind: input, shape index: {}]
  %s2 = inlined_call_operand.vmem [shape: bf16[32,128], index: 2, kind: input, shape index: {}]
  %s3 = inlined_call_operand.vmem [shape: f32[32,128], index: 3, kind: input, shape index: {}]
  %s4 = inlined_call_operand.vmem [shape: f32[1,128], index: 4, kind: input, shape index: {}]
  %s5 = inlined_call_operand.vmem [shape: f32[8,2], index: 5, kind: output, shape index: {}]
  %s6 = sld [smem:[#allocation0]]
  $region34: #{lstm_forward.1} parent=0
    _
  %s8 = ssub.s32 1, %s6
  %s9 = scalar_select 0, %s8, %s6
  $region1: #{lstm_forward.1} parent=0
    #allocation2 [shape = 'u8[65536]{0}', space=vmem, size = 0x10000, scoped, tag = 'input window, operand 1, single buffered']
    #allocation3 [shape = 's32[1]{0}', space=sflag, size = 0x4, scoped, tag = 'scoped memory for lstm_forward.1']
    %10 = vsyncpa [#allocation3], 0
    // Predicated region
    $region2: #{lstm_forward.1} parent=1 // pred_check
      _
    $region3: #{lstm_forward.1} parent=1 // pred_check_branch
      %12 = sbr.rel (0) target = $region5
    $region4: #{lstm_forward.1} parent=1 // pred_region
      _
    $region5: #{lstm_forward.1} parent=1 // pred_fallthru
      _
    // Predicated region
    $region6: #{lstm_forward.1} parent=1 // pred_check
      _
    $region7: #{lstm_forward.1} parent=1 // pred_check_branch
      %14 = sbr.rel (0) target = $region9
    $region8: #{lstm_forward.1} parent=1 // pred_region
      %s16 = ssub.s32 2048, 2048
      %17 = vsyncadd [#allocation3], %s16
      %s18 = sshll.u32 [#allocation2], 4
      %s19 = int_to_ptr.vmem [resolvable:$true] %s18
      %24 = dma.hbm_to_vmem [thread:$0]  %s1, 2048, %s19, [#allocation3], 128, 128, 8
    $region9: #{lstm_forward.1} parent=1 // pred_fallthru
      _
    // Predicated region
    $region10: #{lstm_forward.1} parent=1 // pred_check
      _
    $region11: #{lstm_forward.1} parent=1 // pred_check_branch
      %26 = sbr.rel (0) target = $region13
    $region12: #{lstm_forward.1} parent=1 // pred_region
      _
    $region13: #{lstm_forward.1} parent=1 // pred_fallthru
      _
    // Predicated region
    $region14: #{lstm_forward.1} parent=1 // pred_check
      _
    $region15: #{lstm_forward.1} parent=1 // pred_check_branch
      %28 = sbr.rel (0) target = $region17
    $region16: #{lstm_forward.1} parent=1 // pred_region
      _
    $region17: #{lstm_forward.1} parent=1 // pred_fallthru
      _
    // Predicated region
    $region18: #{lstm_forward.1} parent=1 // pred_check
      _
    $region19: #{lstm_forward.1} parent=1 // pred_check_branch
      %30 = sbr.rel (0) target = $region21
    $region20: #{lstm_forward.1} parent=1 // pred_region
      _
    $region21: #{lstm_forward.1} parent=1 // pred_fallthru
      _
    // Predicated region
    $region22: #{lstm_forward.1} parent=1 // pred_check
      _
    $region23: #{lstm_forward.1} parent=1 // pred_check_branch
      %32 = sbr.rel (0) target = $region25
    $region24: #{lstm_forward.1} parent=1 // pred_region
      %33 = dma.done [#allocation3], 2048
    $region25: #{lstm_forward.1} parent=1 // pred_fallthru
      _
    %v35 = vld [vmem:[%s0] sm:$0xff]
    %v36 = vld [vmem:[%s0 + $0x8] sm:$0xff]
    %v37 = vld [vmem:[%s0 + $0x10] sm:$0xff]
    %v38 = vld [vmem:[%s0 + $0x18] sm:$0xff]
    %v39 = vld [vmem:[%s0 + $0x20] sm:$0xff]
    %v40 = vld [vmem:[%s0 + $0x28] sm:$0xff]
    %v41 = vld [vmem:[%s0 + $0x30] sm:$0xff]
    %v42 = vld [vmem:[%s0 + $0x38] sm:$0xff]
    %v43 = vlaneseq
    %v44 = vand.u32 %v43, 127
    %45 = vset.pattern.permute.xlu0 0
    %46 = vperm.xlu0 %45, %v35
    %v47 = vpop.permute.xlu0 %46
    %48 = vset.pattern.permute.xlu0 0
    %49 = vperm.xlu0 %48, %v36
    %v50 = vpop.permute.xlu0 %49
    %51 = vset.pattern.permute.xlu0 0
    %52 = vperm.xlu0 %51, %v37
    %v53 = vpop.permute.xlu0 %52
    %54 = vset.pattern.permute.xlu0 0
    %55 = vperm.xlu0 %54, %v38
    %v56 = vpop.permute.xlu0 %55
    %57 = vset.pattern.permute.xlu0 0
    %58 = vperm.xlu0 %57, %v39
    %v59 = vpop.permute.xlu0 %58
    %60 = vset.pattern.permute.xlu0 0
    %61 = vperm.xlu0 %60, %v40
    %v62 = vpop.permute.xlu0 %61
    %63 = vset.pattern.permute.xlu0 0
    %64 = vperm.xlu0 %63, %v41
    %v65 = vpop.permute.xlu0 %64
    %66 = vset.pattern.permute.xlu0 0
    %67 = vperm.xlu0 %66, %v42
    %v68 = vpop.permute.xlu0 %67
    %vm69 = vcmp.eq.s32.totalorder %v44, %v47
    %vm70 = vcmp.eq.s32.totalorder %v44, %v50
    %vm71 = vcmp.eq.s32.totalorder %v44, %v53
    %vm72 = vcmp.eq.s32.totalorder %v44, %v56
    %vm73 = vcmp.eq.s32.totalorder %v44, %v59
    %vm74 = vcmp.eq.s32.totalorder %v44, %v62
    %vm75 = vcmp.eq.s32.totalorder %v44, %v65
    %vm76 = vcmp.eq.s32.totalorder %v44, %v68
    %v77 = vsel %vm69, 1, 0
    %v78 = vsel %vm70, 1, 0
    %v79 = vsel %vm71, 1, 0
    %v80 = vsel %vm72, 1, 0
    %v81 = vsel %vm73, 1, 0
    %v82 = vsel %vm74, 1, 0
    %v83 = vsel %vm75, 1, 0
    %v84 = vsel %vm76, 1, 0
    %v85 = vcvt.s32.f32 %v77
    %v86 = vcvt.s32.f32 %v78
    %v87 = vcvt.s32.f32 %v79
    %v88 = vcvt.s32.f32 %v80
    %v89 = vcvt.s32.f32 %v81
    %v90 = vcvt.s32.f32 %v82
    %v91 = vcvt.s32.f32 %v83
    %v92 = vcvt.s32.f32 %v84
    %v93 = vld [vmem:[#allocation2] sm:$0xff]
    %v94 = vld [vmem:[#allocation2 + $0x8] sm:$0xff]
    %v95 = vld [vmem:[#allocation2 + $0x10] sm:$0xff]
    %v96 = vld [vmem:[#allocation2 + $0x18] sm:$0xff]
    %v97 = vld [vmem:[#allocation2 + $0x20] sm:$0xff]
    %v98 = vld [vmem:[#allocation2 + $0x28] sm:$0xff]
    %v99 = vld [vmem:[#allocation2 + $0x30] sm:$0xff]
    %v100 = vld [vmem:[#allocation2 + $0x38] sm:$0xff]
    %v101 = vld [vmem:[#allocation2 + $0x40] sm:$0xff]
    %v102 = vld [vmem:[#allocation2 + $0x48] sm:$0xff]
    %v103 = vld [vmem:[#allocation2 + $0x50] sm:$0xff]
    %v104 = vld [vmem:[#allocation2 + $0x58] sm:$0xff]
    %v105 = vld [vmem:[#allocation2 + $0x60] sm:$0xff]
    %v106 = vld [vmem:[#allocation2 + $0x68] sm:$0xff]
    %v107 = vld [vmem:[#allocation2 + $0x70] sm:$0xff]
    %v108 = vld [vmem:[#allocation2 + $0x78] sm:$0xff]
    %109 = vmatprep.subr.mxu0 0.0
    %110 = vmatpush1.msra.mxu0 %v93
    %111 = vmatprep.subr.mxu0 0.0
    %112 = vmatpush1.msra.mxu0 %v94
    %113 = vmatprep.subr.mxu0 0.0
    %114 = vmatpush1.msra.mxu0 %v95
    %115 = vmatprep.subr.mxu0 0.0
    %116 = vmatpush1.msra.mxu0 %v96
    %117 = vmatprep.subr.mxu0 0.0
    %118 = vmatpush1.msra.mxu0 %v97
    %119 = vmatprep.subr.mxu0 0.0
    %120 = vmatpush1.msra.mxu0 %v98
    %121 = vmatprep.subr.mxu0 0.0
    %122 = vmatpush1.msra.mxu0 %v99
    %123 = vmatprep.subr.mxu0 0.0
    %124 = vmatpush1.msra.mxu0 %v100
    %125 = vmatprep.subr.mxu0 0.0
    %126 = vmatpush1.msra.mxu0 %v101
    %127 = vmatprep.subr.mxu0 0.0
    %128 = vmatpush1.msra.mxu0 %v102
    %129 = vmatprep.subr.mxu0 0.0
    %130 = vmatpush1.msra.mxu0 %v103
    %131 = vmatprep.subr.mxu0 0.0
    %132 = vmatpush1.msra.mxu0 %v104
    %133 = vmatprep.subr.mxu0 0.0
    %134 = vmatpush1.msra.mxu0 %v105
    %135 = vmatprep.subr.mxu0 0.0
    %136 = vmatpush1.msra.mxu0 %v106
    %137 = vmatprep.subr.mxu0 0.0
    %138 = vmatpush1.msra.mxu0 %v107
    %139 = vmatprep.subr.mxu0 0.0
    %140 = vmatpush1.msra.mxu0 %v108
    %141 = vmatprep.subr.mxu0 0.0
    %142 = vmatpush1.msra.mxu0 0.0
    %143 = vmatprep.subr.mxu0 0.0
    %144 = vmatpush1.msra.mxu0 0.0
    %145 = vmatprep.subr.mxu0 0.0
    %146 = vmatpush1.msra.mxu0 0.0
    %147 = vmatprep.subr.mxu0 0.0
    %148 = vmatpush1.msra.mxu0 0.0
    %149 = vmatprep.subr.mxu0 0.0
    %150 = vmatpush1.msra.mxu0 0.0
    %151 = vmatprep.subr.mxu0 0.0
    %152 = vmatpush1.msra.mxu0 0.0
    %153 = vmatprep.subr.mxu0 0.0
    %154 = vmatpush1.msra.mxu0 0.0
    %155 = vmatprep.subr.mxu0 0.0
    %156 = vmatpush1.msra.mxu0 0.0
    %157 = vmatprep.subr.mxu0 0.0
    %158 = vmatpush1.msra.mxu0 0.0
    %159 = vmatprep.subr.mxu0 0.0
    %160 = vmatpush1.msra.mxu0 0.0
    %161 = vmatprep.subr.mxu0 0.0
    %162 = vmatpush1.msra.mxu0 0.0
    %163 = vmatprep.subr.mxu0 0.0
    %164 = vmatpush1.msra.mxu0 0.0
    %165 = vmatprep.subr.mxu0 0.0
    %166 = vmatpush1.msra.mxu0 0.0
    %167 = vmatprep.subr.mxu0 0.0
    %168 = vmatpush1.msra.mxu0 0.0
    %169 = vmatprep.subr.mxu0 0.0
    %170 = vmatpush1.msra.mxu0 0.0
    %171 = vmatprep.subr.mxu0 0.0
    %172 = vmatpush1.msra.mxu0 0.0
    %173 = vmatprep.mubr.f32.mxu0 0.0
    %174 = vmatmul.mubr.f32.gmra.mrb[0].mxu0 %v85
    %v175 = vpop.f32.mrb[0].mxu0
    %v176 = vadd.f32 0.0, %v175
    %v177 = vpop.f32.mrb[0].mxu0
    %178 = vmatprep.mubr.f32.mxu0 0.0
    %179 = vmatmul.mubr.f32.gmra.mrb[0].mxu0 %v86
    %v180 = vpop.f32.mrb[0].mxu0
    %v181 = vadd.f32 0.0, %v180
    %v182 = vpop.f32.mrb[0].mxu0
    %183 = vmatprep.mubr.f32.mxu0 0.0
    %184 = vmatmul.mubr.f32.gmra.mrb[0].mxu0 %v87
    %v185 = vpop.f32.mrb[0].mxu0
    %v186 = vadd.f32 0.0, %v185
    %v187 = vpop.f32.mrb[0].mxu0
    %188 = vmatprep.mubr.f32.mxu0 0.0
    %189 = vmatmul.mubr.f32.gmra.mrb[0].mxu0 %v88
    %v190 = vpop.f32.mrb[0].mxu0
    %v191 = vadd.f32 0.0, %v190
    %v192 = vpop.f32.mrb[0].mxu0
    %193 = vmatprep.mubr.f32.mxu0 0.0
    %194 = vmatmul.mubr.f32.gmra.mrb[0].mxu0 %v89
    %v195 = vpop.f32.mrb[0].mxu0
    %v196 = vadd.f32 0.0, %v195
    %v197 = vpop.f32.mrb[0].mxu0
    %198 = vmatprep.mubr.f32.mxu0 0.0
    %199 = vmatmul.mubr.f32.gmra.mrb[0].mxu0 %v90
    %v200 = vpop.f32.mrb[0].mxu0
    %v201 = vadd.f32 0.0, %v200
    %v202 = vpop.f32.mrb[0].mxu0
    %203 = vmatprep.mubr.f32.mxu0 0.0
    %204 = vmatmul.mubr.f32.gmra.mrb[0].mxu0 %v91
    %v205 = vpop.f32.mrb[0].mxu0
    %v206 = vadd.f32 0.0, %v205
    %v207 = vpop.f32.mrb[0].mxu0
    %208 = vmatprep.mubr.f32.mxu0 0.0
    %209 = vmatmul.mubr.f32.gmra.mrb[0].mxu0 %v92
    %v210 = vpop.f32.mrb[0].mxu0
    %v211 = vadd.f32 0.0, %v210
    %v212 = vpop.f32.mrb[0].mxu0
    %213 = vdwg.mxu0
    %v214 = vld [vmem:[%s2] sm:$0xf]
    %v215 = vld [vmem:[%s2 + $0x4] sm:$0xf]
    %v216 = vld [vmem:[%s2 + $0x8] sm:$0xf]
    %v217 = vld [vmem:[%s2 + $0xc] sm:$0xf]
    %v222 = vunpack.c.l.b16 %v214
    %v223 = vunpack.c.l.b16 %v215
    %v224 = vunpack.c.l.b16 %v216
    %v225 = vunpack.c.l.b16 %v217
    %v226 = vpack.c.b16 %v223, %v222
    %v227 = vpack.c.b16 %v225, %v224
    %vm230 = vcmask 261120
    %v232 = vsel %vm230, 0, 0
    %234 = vmatprep.subr.bf16.mxu0 0
    %235 = vmatpush1.bf16.msra.mxu0 %v226
    %236 = vmatprep.subr.bf16.mxu0 0
    %237 = vmatpush1.bf16.msra.mxu0 %v227
    %238 = vmatprep.subr.bf16.mxu0 0
    %239 = vmatpush1.bf16.msra.mxu0 0
    %240 = vmatprep.subr.bf16.mxu0 0
    %241 = vmatpush1.bf16.msra.mxu0 0
    %242 = vmatprep.subr.bf16.mxu0 0
    %243 = vmatpush1.bf16.msra.mxu0 0
    %244 = vmatprep.subr.bf16.mxu0 0
    %245 = vmatpush1.bf16.msra.mxu0 0
    %246 = vmatprep.subr.bf16.mxu0 0
    %247 = vmatpush1.bf16.msra.mxu0 0
    %248 = vmatprep.subr.bf16.mxu0 0
    %249 = vmatpush1.bf16.msra.mxu0 0
    %250 = vmatprep.subr.bf16.mxu0 0
    %251 = vmatpush1.bf16.msra.mxu0 0
    %252 = vmatprep.subr.bf16.mxu0 0
    %253 = vmatpush1.bf16.msra.mxu0 0
    %254 = vmatprep.subr.bf16.mxu0 0
    %255 = vmatpush1.bf16.msra.mxu0 0
    %256 = vmatprep.subr.bf16.mxu0 0
    %257 = vmatpush1.bf16.msra.mxu0 0
    %258 = vmatprep.subr.bf16.mxu0 0
    %259 = vmatpush1.bf16.msra.mxu0 0
    %260 = vmatprep.subr.bf16.mxu0 0
    %261 = vmatpush1.bf16.msra.mxu0 0
    %262 = vmatprep.subr.bf16.mxu0 0
    %263 = vmatpush1.bf16.msra.mxu0 0
    %264 = vmatprep.subr.bf16.mxu0 0
    %265 = vmatpush1.bf16.msra.mxu0 0
    %266 = vmatprep.mubr.bf16.mxu0 0
    %267 = vmatmul.mubr.bf16.gmra.mrb[0].mxu0 %v232
    %v268 = vpop.f32.mrb[0].mxu0
    %v269 = vadd.f32 0.0, %v268
    %v270 = vpop.f32.mrb[0].mxu0
    %v271 = vpop.f32.mrb[0].mxu0
    %v272 = vpop.f32.mrb[0].mxu0
    %273 = vdwg.mxu0
    %v274 = vadd.f32 %v176, %v269
    %v275 = vxor.u32 %v274, 2147483648
    %v276 = vmul.f32 %v275, 1.442695
    %v277 = vpow.pop %v276
    %v278 = vadd.f32 %v277, 1.0
    %v279 = vrcp.pop %v278
    %v280 = vmul.f32 1.0, %v279
    %v281 = vmul.f32 %v280, 2.0
    %v282 = vsub.f32 %v281, 1.0
    %v283 = vmul.f32 %v280, 0.0
    %285 = vrot.lane.b32.xlu0 %v282, 32
    %v286 = vpop.permute.xlu0 %285
    %v288 = vmul.f32 %v280, %v286
    %290 = vrot.lane.b32.xlu0 %v288, 32
    %v291 = vpop.permute.xlu0 %290
    %v293 = vadd.f32 %v283, %v291
    %v294 = vtanh.pop %v293
    %296 = vrot.lane.b32.xlu0 %v294, 32
    %v297 = vpop.permute.xlu0 %296
    %v299 = vmul.f32 %v280, %v297
    %v300 = vadd.f32 %v299, 0.0
    %v301 = vpack.c.bf16 %v299, %v299
    %303 = vrot.lane.b32.xlu0 %v301, 64
    %v304 = vpop.permute.xlu0 %303
    %v306 = vsel %vm230, %v304, 0
    %308 = vmatprep.subr.bf16.mxu0 0
    %309 = vmatpush1.bf16.msra.mxu0 %v226
    %310 = vmatprep.subr.bf16.mxu0 0
    %311 = vmatpush1.bf16.msra.mxu0 %v227
    %312 = vmatprep.subr.bf16.mxu0 0
    %313 = vmatpush1.bf16.msra.mxu0 0
    %314 = vmatprep.subr.bf16.mxu0 0
    %315 = vmatpush1.bf16.msra.mxu0 0
    %316 = vmatprep.subr.bf16.mxu0 0
    %317 = vmatpush1.bf16.msra.mxu0 0
    %318 = vmatprep.subr.bf16.mxu0 0
    %319 = vmatpush1.bf16.msra.mxu0 0
    %320 = vmatprep.subr.bf16.mxu0 0
    %321 = vmatpush1.bf16.msra.mxu0 0
    %322 = vmatprep.subr.bf16.mxu0 0
    %323 = vmatpush1.bf16.msra.mxu0 0
    %324 = vmatprep.subr.bf16.mxu0 0
    %325 = vmatpush1.bf16.msra.mxu0 0
    %326 = vmatprep.subr.bf16.mxu0 0
    %327 = vmatpush1.bf16.msra.mxu0 0
    %328 = vmatprep.subr.bf16.mxu0 0
    %329 = vmatpush1.bf16.msra.mxu0 0
    %330 = vmatprep.subr.bf16.mxu0 0
    %331 = vmatpush1.bf16.msra.mxu0 0
    %332 = vmatprep.subr.bf16.mxu0 0
    %333 = vmatpush1.bf16.msra.mxu0 0
    %334 = vmatprep.subr.bf16.mxu0 0
    %335 = vmatpush1.bf16.msra.mxu0 0
    %336 = vmatprep.subr.bf16.mxu0 0
    %337 = vmatpush1.bf16.msra.mxu0 0
    %338 = vmatprep.subr.bf16.mxu0 0
    %339 = vmatpush1.bf16.msra.mxu0 0
    %340 = vmatprep.mubr.bf16.mxu0 0
    %341 = vmatmul.mubr.bf16.gmra.mrb[0].mxu0 %v306
    %v342 = vpop.f32.mrb[0].mxu0
    %v343 = vadd.f32 0.0, %v342
    %v344 = vpop.f32.mrb[0].mxu0
    %v345 = vpop.f32.mrb[0].mxu0
    %v346 = vpop.f32.mrb[0].mxu0
    %347 = vdwg.mxu0
    %v348 = vadd.f32 %v181, %v343
    %v349 = vxor.u32 %v348, 2147483648
    %v350 = vmul.f32 %v349, 1.442695
    %v351 = vpow.pop %v350
    %v352 = vadd.f32 %v351, 1.0
    %v353 = vrcp.pop %v352
    %v354 = vmul.f32 1.0, %v353
    %v355 = vmul.f32 %v354, 2.0
    %v356 = vsub.f32 %v355, 1.0
    %v357 = vmul.f32 %v354, %v293
    %359 = vrot.lane.b32.xlu0 %v356, 32
    %v360 = vpop.permute.xlu0 %359
    %v362 = vmul.f32 %v354, %v360
    %364 = vrot.lane.b32.xlu0 %v362, 32
    %v365 = vpop.permute.xlu0 %364
    %v367 = vadd.f32 %v357, %v365
    %v368 = vtanh.pop %v367
    %370 = vrot.lane.b32.xlu0 %v368, 32
    %v371 = vpop.permute.xlu0 %370
    %v373 = vmul.f32 %v354, %v371
    %v374 = vadd.f32 %v300, %v373
    %v375 = vpack.c.bf16 %v373, %v373
    %377 = vrot.lane.b32.xlu0 %v375, 64
    %v378 = vpop.permute.xlu0 %377
    %v380 = vsel %vm230, %v378, 0
    %382 = vmatprep.subr.bf16.mxu0 0
    %383 = vmatpush1.bf16.msra.mxu0 %v226
    %384 = vmatprep.subr.bf16.mxu0 0
    %385 = vmatpush1.bf16.msra.mxu0 %v227
    %386 = vmatprep.subr.bf16.mxu0 0
    %387 = vmatpush1.bf16.msra.mxu0 0
    %388 = vmatprep.subr.bf16.mxu0 0
    %389 = vmatpush1.bf16.msra.mxu0 0
    %390 = vmatprep.subr.bf16.mxu0 0
    %391 = vmatpush1.bf16.msra.mxu0 0
    %392 = vmatprep.subr.bf16.mxu0 0
    %393 = vmatpush1.bf16.msra.mxu0 0
    %394 = vmatprep.subr.bf16.mxu0 0
    %395 = vmatpush1.bf16.msra.mxu0 0
    %396 = vmatprep.subr.bf16.mxu0 0
    %397 = vmatpush1.bf16.msra.mxu0 0
    %398 = vmatprep.subr.bf16.mxu0 0
    %399 = vmatpush1.bf16.msra.mxu0 0
    %400 = vmatprep.subr.bf16.mxu0 0
    %401 = vmatpush1.bf16.msra.mxu0 0
    %402 = vmatprep.subr.bf16.mxu0 0
    %403 = vmatpush1.bf16.msra.mxu0 0
    %404 = vmatprep.subr.bf16.mxu0 0
    %405 = vmatpush1.bf16.msra.mxu0 0
    %406 = vmatprep.subr.bf16.mxu0 0
    %407 = vmatpush1.bf16.msra.mxu0 0
    %408 = vmatprep.subr.bf16.mxu0 0
    %409 = vmatpush1.bf16.msra.mxu0 0
    %410 = vmatprep.subr.bf16.mxu0 0
    %411 = vmatpush1.bf16.msra.mxu0 0
    %412 = vmatprep.subr.bf16.mxu0 0
    %413 = vmatpush1.bf16.msra.mxu0 0
    %414 = vmatprep.mubr.bf16.mxu0 0
    %415 = vmatmul.mubr.bf16.gmra.mrb[0].mxu0 %v380
    %v416 = vpop.f32.mrb[0].mxu0
    %v417 = vadd.f32 0.0, %v416
    %v418 = vpop.f32.mrb[0].mxu0
    %v419 = vpop.f32.mrb[0].mxu0
    %v420 = vpop.f32.mrb[0].mxu0
    %421 = vdwg.mxu0
    %v422 = vadd.f32 %v186, %v417
    %v423 = vxor.u32 %v422, 2147483648
    %v424 = vmul.f32 %v423, 1.442695
    %v425 = vpow.pop %v424
    %v426 = vadd.f32 %v425, 1.0
    %v427 = vrcp.pop %v426
    %v428 = vmul.f32 1.0, %v427
    %v429 = vmul.f32 %v428, 2.0
    %v430 = vsub.f32 %v429, 1.0
    %v431 = vmul.f32 %v428, %v367
    %433 = vrot.lane.b32.xlu0 %v430, 32
    %v434 = vpop.permute.xlu0 %433
    %v436 = vmul.f32 %v428, %v434
    %438 = vrot.lane.b32.xlu0 %v436, 32
    %v439 = vpop.permute.xlu0 %438
    %v441 = vadd.f32 %v431, %v439
    %v442 = vtanh.pop %v441
    %444 = vrot.lane.b32.xlu0 %v442, 32
    %v445 = vpop.permute.xlu0 %444
    %v447 = vmul.f32 %v428, %v445
    %v448 = vadd.f32 %v374, %v447
    %v449 = vpack.c.bf16 %v447, %v447
    %451 = vrot.lane.b32.xlu0 %v449, 64
    %v452 = vpop.permute.xlu0 %451
    %v454 = vsel %vm230, %v452, 0
    %456 = vmatprep.subr.bf16.mxu0 0
    %457 = vmatpush1.bf16.msra.mxu0 %v226
    %458 = vmatprep.subr.bf16.mxu0 0
    %459 = vmatpush1.bf16.msra.mxu0 %v227
    %460 = vmatprep.subr.bf16.mxu0 0
    %461 = vmatpush1.bf16.msra.mxu0 0
    %462 = vmatprep.subr.bf16.mxu0 0
    %463 = vmatpush1.bf16.msra.mxu0 0
    %464 = vmatprep.subr.bf16.mxu0 0
    %465 = vmatpush1.bf16.msra.mxu0 0
    %466 = vmatprep.subr.bf16.mxu0 0
    %467 = vmatpush1.bf16.msra.mxu0 0
    %468 = vmatprep.subr.bf16.mxu0 0
    %469 = vmatpush1.bf16.msra.mxu0 0
    %470 = vmatprep.subr.bf16.mxu0 0
    %471 = vmatpush1.bf16.msra.mxu0 0
    %472 = vmatprep.subr.bf16.mxu0 0
    %473 = vmatpush1.bf16.msra.mxu0 0
    %474 = vmatprep.subr.bf16.mxu0 0
    %475 = vmatpush1.bf16.msra.mxu0 0
    %476 = vmatprep.subr.bf16.mxu0 0
    %477 = vmatpush1.bf16.msra.mxu0 0
    %478 = vmatprep.subr.bf16.mxu0 0
    %479 = vmatpush1.bf16.msra.mxu0 0
    %480 = vmatprep.subr.bf16.mxu0 0
    %481 = vmatpush1.bf16.msra.mxu0 0
    %482 = vmatprep.subr.bf16.mxu0 0
    %483 = vmatpush1.bf16.msra.mxu0 0
    %484 = vmatprep.subr.bf16.mxu0 0
    %485 = vmatpush1.bf16.msra.mxu0 0
    %486 = vmatprep.subr.bf16.mxu0 0
    %487 = vmatpush1.bf16.msra.mxu0 0
    %488 = vmatprep.mubr.bf16.mxu0 0
    %489 = vmatmul.mubr.bf16.gmra.mrb[0].mxu0 %v454
    %v490 = vpop.f32.mrb[0].mxu0
    %v491 = vadd.f32 0.0, %v490
    %v492 = vpop.f32.mrb[0].mxu0
    %v493 = vpop.f32.mrb[0].mxu0
    %v494 = vpop.f32.mrb[0].mxu0
    %495 = vdwg.mxu0
    %v496 = vadd.f32 %v191, %v491
    %v497 = vxor.u32 %v496, 2147483648
    %v498 = vmul.f32 %v497, 1.442695
    %v499 = vpow.pop %v498
    %v500 = vadd.f32 %v499, 1.0
    %v501 = vrcp.pop %v500
    %v502 = vmul.f32 1.0, %v501
    %v503 = vmul.f32 %v502, 2.0
    %v504 = vsub.f32 %v503, 1.0
    %v505 = vmul.f32 %v502, %v441
    %507 = vrot.lane.b32.xlu0 %v504, 32
    %v508 = vpop.permute.xlu0 %507
    %v510 = vmul.f32 %v502, %v508
    %512 = vrot.lane.b32.xlu0 %v510, 32
    %v513 = vpop.permute.xlu0 %512
    %v515 = vadd.f32 %v505, %v513
    %v516 = vtanh.pop %v515
    %518 = vrot.lane.b32.xlu0 %v516, 32
    %v519 = vpop.permute.xlu0 %518
    %v521 = vmul.f32 %v502, %v519
    %v522 = vadd.f32 %v448, %v521
    %v523 = vpack.c.bf16 %v521, %v521
    %525 = vrot.lane.b32.xlu0 %v523, 64
    %v526 = vpop.permute.xlu0 %525
    %v528 = vsel %vm230, %v526, 0
    %530 = vmatprep.subr.bf16.mxu0 0
    %531 = vmatpush1.bf16.msra.mxu0 %v226
    %532 = vmatprep.subr.bf16.mxu0 0
    %533 = vmatpush1.bf16.msra.mxu0 %v227
    %534 = vmatprep.subr.bf16.mxu0 0
    %535 = vmatpush1.bf16.msra.mxu0 0
    %536 = vmatprep.subr.bf16.mxu0 0
    %537 = vmatpush1.bf16.msra.mxu0 0
    %538 = vmatprep.subr.bf16.mxu0 0
    %539 = vmatpush1.bf16.msra.mxu0 0
    %540 = vmatprep.subr.bf16.mxu0 0
    %541 = vmatpush1.bf16.msra.mxu0 0
    %542 = vmatprep.subr.bf16.mxu0 0
    %543 = vmatpush1.bf16.msra.mxu0 0
    %544 = vmatprep.subr.bf16.mxu0 0
    %545 = vmatpush1.bf16.msra.mxu0 0
    %546 = vmatprep.subr.bf16.mxu0 0
    %547 = vmatpush1.bf16.msra.mxu0 0
    %548 = vmatprep.subr.bf16.mxu0 0
    %549 = vmatpush1.bf16.msra.mxu0 0
    %550 = vmatprep.subr.bf16.mxu0 0
    %551 = vmatpush1.bf16.msra.mxu0 0
    %552 = vmatprep.subr.bf16.mxu0 0
    %553 = vmatpush1.bf16.msra.mxu0 0
    %554 = vmatprep.subr.bf16.mxu0 0
    %555 = vmatpush1.bf16.msra.mxu0 0
    %556 = vmatprep.subr.bf16.mxu0 0
    %557 = vmatpush1.bf16.msra.mxu0 0
    %558 = vmatprep.subr.bf16.mxu0 0
    %559 = vmatpush1.bf16.msra.mxu0 0
    %560 = vmatprep.subr.bf16.mxu0 0
    %561 = vmatpush1.bf16.msra.mxu0 0
    %562 = vmatprep.mubr.bf16.mxu0 0
    %563 = vmatmul.mubr.bf16.gmra.mrb[0].mxu0 %v528
    %v564 = vpop.f32.mrb[0].mxu0
    %v565 = vadd.f32 0.0, %v564
    %v566 = vpop.f32.mrb[0].mxu0
    %v567 = vpop.f32.mrb[0].mxu0
    %v568 = vpop.f32.mrb[0].mxu0
    %569 = vdwg.mxu0
    %v570 = vadd.f32 %v196, %v565
    %v571 = vxor.u32 %v570, 2147483648
    %v572 = vmul.f32 %v571, 1.442695
    %v573 = vpow.pop %v572
    %v574 = vadd.f32 %v573, 1.0
    %v575 = vrcp.pop %v574
    %v576 = vmul.f32 1.0, %v575
    %v577 = vmul.f32 %v576, 2.0
    %v578 = vsub.f32 %v577, 1.0
    %v579 = vmul.f32 %v576, %v515
    %581 = vrot.lane.b32.xlu0 %v578, 32
    %v582 = vpop.permute.xlu0 %581
    %v584 = vmul.f32 %v576, %v582
    %586 = vrot.lane.b32.xlu0 %v584, 32
    %v587 = vpop.permute.xlu0 %586
    %v589 = vadd.f32 %v579, %v587
    %v590 = vtanh.pop %v589
    %592 = vrot.lane.b32.xlu0 %v590, 32
    %v593 = vpop.permute.xlu0 %592
    %v595 = vmul.f32 %v576, %v593
    %v596 = vadd.f32 %v522, %v595
    %v597 = vpack.c.bf16 %v595, %v595
    %599 = vrot.lane.b32.xlu0 %v597, 64
    %v600 = vpop.permute.xlu0 %599
    %v602 = vsel %vm230, %v600, 0
    %604 = vmatprep.subr.bf16.mxu0 0
    %605 = vmatpush1.bf16.msra.mxu0 %v226
    %606 = vmatprep.subr.bf16.mxu0 0
    %607 = vmatpush1.bf16.msra.mxu0 %v227
    %608 = vmatprep.subr.bf16.mxu0 0
    %609 = vmatpush1.bf16.msra.mxu0 0
    %610 = vmatprep.subr.bf16.mxu0 0
    %611 = vmatpush1.bf16.msra.mxu0 0
    %612 = vmatprep.subr.bf16.mxu0 0
    %613 = vmatpush1.bf16.msra.mxu0 0
    %614 = vmatprep.subr.bf16.mxu0 0
    %615 = vmatpush1.bf16.msra.mxu0 0
    %616 = vmatprep.subr.bf16.mxu0 0
    %617 = vmatpush1.bf16.msra.mxu0 0
    %618 = vmatprep.subr.bf16.mxu0 0
    %619 = vmatpush1.bf16.msra.mxu0 0
    %620 = vmatprep.subr.bf16.mxu0 0
    %621 = vmatpush1.bf16.msra.mxu0 0
    %622 = vmatprep.subr.bf16.mxu0 0
    %623 = vmatpush1.bf16.msra.mxu0 0
    %624 = vmatprep.subr.bf16.mxu0 0
    %625 = vmatpush1.bf16.msra.mxu0 0
    %626 = vmatprep.subr.bf16.mxu0 0
    %627 = vmatpush1.bf16.msra.mxu0 0
    %628 = vmatprep.subr.bf16.mxu0 0
    %629 = vmatpush1.bf16.msra.mxu0 0
    %630 = vmatprep.subr.bf16.mxu0 0
    %631 = vmatpush1.bf16.msra.mxu0 0
    %632 = vmatprep.subr.bf16.mxu0 0
    %633 = vmatpush1.bf16.msra.mxu0 0
    %634 = vmatprep.subr.bf16.mxu0 0
    %635 = vmatpush1.bf16.msra.mxu0 0
    %636 = vmatprep.mubr.bf16.mxu0 0
    %637 = vmatmul.mubr.bf16.gmra.mrb[0].mxu0 %v602
    %v638 = vpop.f32.mrb[0].mxu0
    %v639 = vadd.f32 0.0, %v638
    %v640 = vpop.f32.mrb[0].mxu0
    %v641 = vpop.f32.mrb[0].mxu0
    %v642 = vpop.f32.mrb[0].mxu0
    %643 = vdwg.mxu0
    %v644 = vadd.f32 %v201, %v639
    %v645 = vxor.u32 %v644, 2147483648
    %v646 = vmul.f32 %v645, 1.442695
    %v647 = vpow.pop %v646
    %v648 = vadd.f32 %v647, 1.0
    %v649 = vrcp.pop %v648
    %v650 = vmul.f32 1.0, %v649
    %v651 = vmul.f32 %v650, 2.0
    %v652 = vsub.f32 %v651, 1.0
    %v653 = vmul.f32 %v650, %v589
    %655 = vrot.lane.b32.xlu0 %v652, 32
    %v656 = vpop.permute.xlu0 %655
    %v658 = vmul.f32 %v650, %v656
    %660 = vrot.lane.b32.xlu0 %v658, 32
    %v661 = vpop.permute.xlu0 %660
    %v663 = vadd.f32 %v653, %v661
    %v664 = vtanh.pop %v663
    %666 = vrot.lane.b32.xlu0 %v664, 32
    %v667 = vpop.permute.xlu0 %666
    %v669 = vmul.f32 %v650, %v667
    %v670 = vadd.f32 %v596, %v669
    %v671 = vpack.c.bf16 %v669, %v669
    %673 = vrot.lane.b32.xlu0 %v671, 64
    %v674 = vpop.permute.xlu0 %673
    %v676 = vsel %vm230, %v674, 0
    %678 = vmatprep.subr.bf16.mxu0 0
    %679 = vmatpush1.bf16.msra.mxu0 %v226
    %680 = vmatprep.subr.bf16.mxu0 0
    %681 = vmatpush1.bf16.msra.mxu0 %v227
    %682 = vmatprep.subr.bf16.mxu0 0
    %683 = vmatpush1.bf16.msra.mxu0 0
    %684 = vmatprep.subr.bf16.mxu0 0
    %685 = vmatpush1.bf16.msra.mxu0 0
    %686 = vmatprep.subr.bf16.mxu0 0
    %687 = vmatpush1.bf16.msra.mxu0 0
    %688 = vmatprep.subr.bf16.mxu0 0
    %689 = vmatpush1.bf16.msra.mxu0 0
    %690 = vmatprep.subr.bf16.mxu0 0
    %691 = vmatpush1.bf16.msra.mxu0 0
    %692 = vmatprep.subr.bf16.mxu0 0
    %693 = vmatpush1.bf16.msra.mxu0 0
    %694 = vmatprep.subr.bf16.mxu0 0
    %695 = vmatpush1.bf16.msra.mxu0 0
    %696 = vmatprep.subr.bf16.mxu0 0
    %697 = vmatpush1.bf16.msra.mxu0 0
    %698 = vmatprep.subr.bf16.mxu0 0
    %699 = vmatpush1.bf16.msra.mxu0 0
    %700 = vmatprep.subr.bf16.mxu0 0
    %701 = vmatpush1.bf16.msra.mxu0 0
    %702 = vmatprep.subr.bf16.mxu0 0
    %703 = vmatpush1.bf16.msra.mxu0 0
    %704 = vmatprep.subr.bf16.mxu0 0
    %705 = vmatpush1.bf16.msra.mxu0 0
    %706 = vmatprep.subr.bf16.mxu0 0
    %707 = vmatpush1.bf16.msra.mxu0 0
    %708 = vmatprep.subr.bf16.mxu0 0
    %709 = vmatpush1.bf16.msra.mxu0 0
    %710 = vmatprep.mubr.bf16.mxu0 0
    %711 = vmatmul.mubr.bf16.gmra.mrb[0].mxu0 %v676
    %v712 = vpop.f32.mrb[0].mxu0
    %v713 = vadd.f32 0.0, %v712
    %v714 = vpop.f32.mrb[0].mxu0
    %v715 = vpop.f32.mrb[0].mxu0
    %v716 = vpop.f32.mrb[0].mxu0
    %717 = vdwg.mxu0
    %v718 = vadd.f32 %v206, %v713
    %v719 = vxor.u32 %v718, 2147483648
    %v720 = vmul.f32 %v719, 1.442695
    %v721 = vpow.pop %v720
    %v722 = vadd.f32 %v721, 1.0
    %v723 = vrcp.pop %v722
    %v724 = vmul.f32 1.0, %v723
    %v725 = vmul.f32 %v724, 2.0
    %v726 = vsub.f32 %v725, 1.0
    %v727 = vmul.f32 %v724, %v663
    %729 = vrot.lane.b32.xlu0 %v726, 32
    %v730 = vpop.permute.xlu0 %729
    %v732 = vmul.f32 %v724, %v730
    %734 = vrot.lane.b32.xlu0 %v732, 32
    %v735 = vpop.permute.xlu0 %734
    %v737 = vadd.f32 %v727, %v735
    %v738 = vtanh.pop %v737
    %740 = vrot.lane.b32.xlu0 %v738, 32
    %v741 = vpop.permute.xlu0 %740
    %v743 = vmul.f32 %v724, %v741
    %v744 = vadd.f32 %v670, %v743
    %v745 = vpack.c.bf16 %v743, %v743
    %747 = vrot.lane.b32.xlu0 %v745, 64
    %v748 = vpop.permute.xlu0 %747
    %v750 = vsel %vm230, %v748, 0
    %752 = vmatprep.subr.bf16.mxu0 0
    %753 = vmatpush1.bf16.msra.mxu0 %v226
    %754 = vmatprep.subr.bf16.mxu0 0
    %755 = vmatpush1.bf16.msra.mxu0 %v227
    %756 = vmatprep.subr.bf16.mxu0 0
    %757 = vmatpush1.bf16.msra.mxu0 0
    %758 = vmatprep.subr.bf16.mxu0 0
    %759 = vmatpush1.bf16.msra.mxu0 0
    %760 = vmatprep.subr.bf16.mxu0 0
    %761 = vmatpush1.bf16.msra.mxu0 0
    %762 = vmatprep.subr.bf16.mxu0 0
    %763 = vmatpush1.bf16.msra.mxu0 0
    %764 = vmatprep.subr.bf16.mxu0 0
    %765 = vmatpush1.bf16.msra.mxu0 0
    %766 = vmatprep.subr.bf16.mxu0 0
    %767 = vmatpush1.bf16.msra.mxu0 0
    %768 = vmatprep.subr.bf16.mxu0 0
    %769 = vmatpush1.bf16.msra.mxu0 0
    %770 = vmatprep.subr.bf16.mxu0 0
    %771 = vmatpush1.bf16.msra.mxu0 0
    %772 = vmatprep.subr.bf16.mxu0 0
    %773 = vmatpush1.bf16.msra.mxu0 0
    %774 = vmatprep.subr.bf16.mxu0 0
    %775 = vmatpush1.bf16.msra.mxu0 0
    %776 = vmatprep.subr.bf16.mxu0 0
    %777 = vmatpush1.bf16.msra.mxu0 0
    %778 = vmatprep.subr.bf16.mxu0 0
    %779 = vmatpush1.bf16.msra.mxu0 0
    %780 = vmatprep.subr.bf16.mxu0 0
    %781 = vmatpush1.bf16.msra.mxu0 0
    %782 = vmatprep.subr.bf16.mxu0 0
    %783 = vmatpush1.bf16.msra.mxu0 0
    %784 = vmatprep.mubr.bf16.mxu0 0
    %785 = vmatmul.mubr.bf16.gmra.mrb[0].mxu0 %v750
    %v786 = vpop.f32.mrb[0].mxu0
    %v787 = vadd.f32 0.0, %v786
    %v788 = vpop.f32.mrb[0].mxu0
    %v789 = vpop.f32.mrb[0].mxu0
    %v790 = vpop.f32.mrb[0].mxu0
    %791 = vdwg.mxu0
    %v792 = vadd.f32 %v211, %v787
    %v793 = vxor.u32 %v792, 2147483648
    %v794 = vmul.f32 %v793, 1.442695
    %v795 = vpow.pop %v794
    %v796 = vadd.f32 %v795, 1.0
    %v797 = vrcp.pop %v796
    %v798 = vmul.f32 1.0, %v797
    %v799 = vmul.f32 %v798, 2.0
    %v800 = vsub.f32 %v799, 1.0
    %v801 = vmul.f32 %v798, %v737
    %803 = vrot.lane.b32.xlu0 %v800, 32
    %v804 = vpop.permute.xlu0 %803
    %v806 = vmul.f32 %v798, %v804
    %808 = vrot.lane.b32.xlu0 %v806, 32
    %v809 = vpop.permute.xlu0 %808
    %v811 = vadd.f32 %v801, %v809
    %v812 = vtanh.pop %v811
    %814 = vrot.lane.b32.xlu0 %v812, 32
    %v815 = vpop.permute.xlu0 %814
    %v817 = vmul.f32 %v798, %v815
    %v818 = vadd.f32 %v744, %v817
    %v819 = vld [vmem:[%s3] sm:$0xff]
    %v820 = vld [vmem:[%s3 + $0x8] sm:$0xff]
    %v821 = vld [vmem:[%s3 + $0x10] sm:$0xff]
    %v822 = vld [vmem:[%s3 + $0x18] sm:$0xff]
    %v823 = vld [vmem:[%s4] sm:$0x1]
    %v825 = vlaneseq
    %v826 = vshrl.u32 %v825, 7
    %v827 = vsub.s32 0, %v826
    %v828 = vrot.slane %v823, %v827
    %831 = vrot.lane.b32.xlu0 %v818, 64
    %v832 = vpop.permute.xlu0 %831
    %v833 = vsel %vm230, %v832, 0
    %835 = vmatprep.subr.mxu0 0.0
    %836 = vmatpush1.msra.mxu0 %v819
    %837 = vmatprep.subr.mxu0 0.0
    %838 = vmatpush1.msra.mxu0 %v820
    %839 = vmatprep.subr.mxu0 0.0
    %840 = vmatpush1.msra.mxu0 %v821
    %841 = vmatprep.subr.mxu0 0.0
    %842 = vmatpush1.msra.mxu0 %v822
    %843 = vmatprep.subr.mxu0 0.0
    %844 = vmatpush1.msra.mxu0 0.0
    %845 = vmatprep.subr.mxu0 0.0
    %846 = vmatpush1.msra.mxu0 0.0
    %847 = vmatprep.subr.mxu0 0.0
    %848 = vmatpush1.msra.mxu0 0.0
    %849 = vmatprep.subr.mxu0 0.0
    %850 = vmatpush1.msra.mxu0 0.0
    %851 = vmatprep.subr.mxu0 0.0
    %852 = vmatpush1.msra.mxu0 0.0
    %853 = vmatprep.subr.mxu0 0.0
    %854 = vmatpush1.msra.mxu0 0.0
    %855 = vmatprep.subr.mxu0 0.0
    %856 = vmatpush1.msra.mxu0 0.0
    %857 = vmatprep.subr.mxu0 0.0
    %858 = vmatpush1.msra.mxu0 0.0
    %859 = vmatprep.subr.mxu0 0.0
    %860 = vmatpush1.msra.mxu0 0.0
    %861 = vmatprep.subr.mxu0 0.0
    %862 = vmatpush1.msra.mxu0 0.0
    %863 = vmatprep.subr.mxu0 0.0
    %864 = vmatpush1.msra.mxu0 0.0
    %865 = vmatprep.subr.mxu0 0.0
    %866 = vmatpush1.msra.mxu0 0.0
    %867 = vmatprep.subr.mxu0 0.0
    %868 = vmatpush1.msra.mxu0 0.0
    %869 = vmatprep.subr.mxu0 0.0
    %870 = vmatpush1.msra.mxu0 0.0
    %871 = vmatprep.subr.mxu0 0.0
    %872 = vmatpush1.msra.mxu0 0.0
    %873 = vmatprep.subr.mxu0 0.0
    %874 = vmatpush1.msra.mxu0 0.0
    %875 = vmatprep.subr.mxu0 0.0
    %876 = vmatpush1.msra.mxu0 0.0
    %877 = vmatprep.subr.mxu0 0.0
    %878 = vmatpush1.msra.mxu0 0.0
    %879 = vmatprep.subr.mxu0 0.0
    %880 = vmatpush1.msra.mxu0 0.0
    %881 = vmatprep.subr.mxu0 0.0
    %882 = vmatpush1.msra.mxu0 0.0
    %883 = vmatprep.subr.mxu0 0.0
    %884 = vmatpush1.msra.mxu0 0.0
    %885 = vmatprep.subr.mxu0 0.0
    %886 = vmatpush1.msra.mxu0 0.0
    %887 = vmatprep.subr.mxu0 0.0
    %888 = vmatpush1.msra.mxu0 0.0
    %889 = vmatprep.subr.mxu0 0.0
    %890 = vmatpush1.msra.mxu0 0.0
    %891 = vmatprep.subr.mxu0 0.0
    %892 = vmatpush1.msra.mxu0 0.0
    %893 = vmatprep.subr.mxu0 0.0
    %894 = vmatpush1.msra.mxu0 0.0
    %895 = vmatprep.subr.mxu0 0.0
    %896 = vmatpush1.msra.mxu0 0.0
    %897 = vmatprep.subr.mxu0 0.0
    %898 = vmatpush1.msra.mxu0 0.0
    %899 = vmatprep.mubr.f32.mxu0 0.0
    %900 = vmatmul.mubr.f32.gmra.mrb[0].mxu0 %v833
    %v901 = vpop.f32.mrb[0].mxu0
    %v902 = vadd.f32 %v828, %v901
    %v903 = vpop.f32.mrb[0].mxu0
    %904 = vdwg.mxu0
    %905 = vmax.xlane.f32.xlu0 %v902
    %v906 = vpop.xlane.xlu0 %905
    %v907 = vsub.f32 %v902, %v906
    %v908 = vmul.f32 %v907, 1.442695
    %v909 = vpow.pop %v908
    %910 = vadd.xlane.f32.xlu0 %v909
    %v911 = vpop.xlane.xlu0 %910
    %v912 = vlog2.pop %v911
    %v913 = vmul.f32 %v912, 0.6931472
    %v914 = vsub.f32 %v907, %v913
    %vm915 = vcmask 15360
    %916 = vst.msk [vmem:[%s5] sm:$0xff] %vm915, %v914
    // Predicated region
    $region26: #{lstm_forward.1} parent=1 // pred_check
      _
    $region27: #{lstm_forward.1} parent=1 // pred_check_branch
      %918 = sbr.rel (0) target = $region29
    $region28: #{lstm_forward.1} parent=1 // pred_region
      _
    $region29: #{lstm_forward.1} parent=1 // pred_fallthru
      _
    // Predicated region
    $region30: #{lstm_forward.1} parent=1 // pred_check
      _
    $region31: #{lstm_forward.1} parent=1 // pred_check_branch
      %920 = sbr.rel (0) target = $region33
    $region32: #{lstm_forward.1} parent=1 // pred_region
      _
    $region33: #{lstm_forward.1} parent=1 // pred_fallthru
      _
    %921 = vsyncpa [#allocation3], 1

</llo_original>
